<compile_context>
chip_gen: v7x
topology: tpu7x:2x2x1
jax: 0.10.0
libtpu: 0.0.40
codegen_flags: <defaults>
</compile_context>

<pallas_src>
import jax
import jax.numpy as jnp
import numpy as np
from jax.experimental import pallas as pl
from jax.experimental.pallas import tpu as pltpu  # noqa: F401  (TPU backend)

# ----- config (mirrors CatPHistCritic.__init__) -------------------------------
NUM_EMBEDDINGS = 18          # embedding table rows; index 0 = masked / pad
EMBED_DIM      = 8           # config.categorical_embed_dim
HIST_DIMS      = (32, 32)    # config.hist_embed_dims
CRITIC_DIMS    = (32,)       # config.critic_layers (+ final output dim 1)
B, T, F        = 16, 8, 4    # batch, history length, categorical feats / step

NT   = B * T                 # 128 flattened history rows -> lane axis
VPAD = 32                    # one-hot height; row VPAD-1 is the b1 sentinel
# weight-slab row offsets (all multiples of 8 -> tile-aligned slices)
OFF_W1, OFF_W2, OFF_WC1, OFF_B, OFF_PT = 0, 32, 64, 96, 128
W_ROWS = OFF_PT + NT         # 256 rows x 128 lanes = 128 KiB, one DMA


# ----- Pallas kernel ----------------------------------------------------------
def _critic_kernel(int_ref, w_ref, out_ref):
    # cat_input = (observed + 1) * mask on the lane-dense (F, NT) int32 slab
    idx = (int_ref[0:F, :] + 1) * int_ref[F:2 * F, :]               # (F, NT)

    # EmbeddingPool (transposed): pooled one-hot (VPAD, NT), accumulated in
    # int32 with a single f32 cast.  The sentinel row VPAD-1 is constant 1 so
    # the fused matmul below also adds b1.
    viota = jax.lax.broadcasted_iota(jnp.int32, (VPAD, NT), 0)
    acc = (viota == VPAD - 1).astype(jnp.int32)                     # sentinel
    for f in range(F):
        acc = acc + (idx[f:f + 1, :] == viota).astype(jnp.int32)
    pooled = acc.astype(jnp.float32)                                 # (VPAD, NT)

    # layer 1: (table @ w1 / F)^T fused with b1 -> pre-ReLU hidden directly
    h = jnp.maximum(
        jnp.dot(w_ref[OFF_W1:OFF_W1 + HIST_DIMS[0], 0:VPAD], pooled,
                preferred_element_type=jnp.float32), 0.0)            # (32, NT)

    # layer 2 (+ b2 column broadcast)
    h = jnp.maximum(
        jnp.dot(w_ref[OFF_W2:OFF_W2 + HIST_DIMS[1], 0:HIST_DIMS[0]], h,
                preferred_element_type=jnp.float32)
        + w_ref[OFF_B:OFF_B + HIST_DIMS[1], 0:1], 0.0)               # (32, NT)

    # .mean(dim=1): one K=NT matmul against the precomputed 1/T pooling slab
    # (lanes >= B of the slab are zero -> embed stays lane-dense at 128).
    embed = jnp.dot(h, w_ref[OFF_PT:OFF_PT + NT, :],
                    preferred_element_type=jnp.float32)              # (32, 128)

    # critic MLP; final (..,1) head as a sublane reduction (no N=1 MXU pass)
    ch = jnp.maximum(
        jnp.dot(w_ref[OFF_WC1:OFF_WC1 + CRITIC_DIMS[0], 0:HIST_DIMS[1]], embed,
                preferred_element_type=jnp.float32)
        + w_ref[OFF_B:OFF_B + CRITIC_DIMS[0], 1:2], 0.0)             # (32, 128)
    v = (jnp.sum(ch * w_ref[OFF_B:OFF_B + CRITIC_DIMS[0], 2:3],
                 axis=0, keepdims=True)
         + w_ref[OFF_B:OFF_B + 1, 3:4])                              # (1, 128)
    out_ref[...] = v          # lanes 0..B-1 = values, lanes >= B = padding


# ----- wrapper ----------------------------------------------------------------
@jax.jit
def cat_p_hist_critic(observed, mask, wslab):
    """observed, mask: (B, T, F) int.  Returns a lane-dense (1, NT) f32 row
    with the B critic values in lanes [0, B); remaining lanes are padding."""
    # Single fused layout op: concat obs+mask, move features to the leading
    # (sublane) axis, flatten (B, T) onto the lane axis.
    both = jnp.concatenate(
        [observed.astype(jnp.int32), mask.astype(jnp.int32)], axis=2)
    int_slab = both.transpose(2, 0, 1).reshape(2 * F, NT)            # (2F, NT)

    return pl.pallas_call(
        _critic_kernel,
        out_shape=jax.ShapeDtypeStruct((1, NT), jnp.float32),
        # no grid: single invocation, whole problem (<140 KiB) resident in VMEM
        in_specs=[
            pl.BlockSpec((2 * F, NT), lambda: (0, 0)),     # obs+mask int slab
            pl.BlockSpec((W_ROWS, NT), lambda: (0, 0)),    # packed param slab
        ],
        out_specs=pl.BlockSpec((1, NT), lambda: (0, 0)),
    )(int_slab, wslab)


# ----- host-side parameter packing (one 128-lane slab, tile-aligned) ----------
def pack_params(p):
    w = np.zeros((W_ROWS, NT), np.float32)

    # fused first layer: (table @ w1 / F)^T, with b1 in the sentinel column
    table = np.asarray(p["table"], np.float32)                 # (V, E)
    w1 = np.asarray(p["w1"], np.float32)                       # (E, H1)
    fused = (table @ w1) / float(F)                            # (V, H1)
    w[OFF_W1:OFF_W1 + HIST_DIMS[0], :NUM_EMBEDDINGS] = fused.T
    w[OFF_W1:OFF_W1 + HIST_DIMS[0], VPAD - 1] = np.asarray(p["b1"]).reshape(-1)

    w[OFF_W2:OFF_W2 + HIST_DIMS[1], :HIST_DIMS[0]] = np.asarray(p["w2"]).T
    w[OFF_WC1:OFF_WC1 + CRITIC_DIMS[0], :HIST_DIMS[1]] = np.asarray(p["wc1"]).T

    # bias columns (features on sublanes -> broadcast along lanes in-kernel)
    w[OFF_B:OFF_B + HIST_DIMS[1], 0] = np.asarray(p["b2"]).reshape(-1)
    w[OFF_B:OFF_B + CRITIC_DIMS[0], 1] = np.asarray(p["bc1"]).reshape(-1)
    w[OFF_B:OFF_B + CRITIC_DIMS[0], 2] = np.asarray(p["wc2"]).reshape(-1)
    w[OFF_B, 3] = float(np.asarray(p["bc2"]).reshape(-1)[0])

    # mean-over-time pooling matrix: PT[n, b] = 1/T iff n // T == b
    n = np.arange(NT)
    w[OFF_PT + n, n // T] = 1.0 / T
    return jnp.asarray(w)


# ----- deterministic parameter init (shapes from __init__) --------------------
def init_params(key):
    ks = jax.random.split(key, 9)

    def dense(k, fan_in, fan_out):
        return (jax.random.normal(k, (fan_in, fan_out), jnp.float32)
                / np.sqrt(fan_in).astype(np.float32))

    def bias(k, fan_out):
        return 0.01 * jax.random.normal(k, (1, fan_out), jnp.float32)

    table = 0.5 * jax.random.normal(ks[0], (NUM_EMBEDDINGS, EMBED_DIM),
                                    jnp.float32)
    table = table.at[0].set(0.0)   # padding row for masked entries

    h1, h2 = HIST_DIMS
    c1 = CRITIC_DIMS[0]
    return {
        "table": table,
        "w1": dense(ks[1], EMBED_DIM, h1), "b1": bias(ks[2], h1),
        "w2": dense(ks[3], h1, h2),        "b2": bias(ks[4], h2),
        "wc1": dense(ks[5], h2, c1),       "bc1": bias(ks[6], c1),
        "wc2": dense(ks[7], c1, 1),        "bc2": bias(ks[8], 1),
    }


# ----- plain-JAX reference (full f32 precision, for verification) -------------
def reference(observed, mask, p):
    hp = jax.lax.Precision.HIGHEST
    idx = (observed + 1) * mask                            # (B, T, F)
    hist = jnp.mean(p["table"][idx], axis=2)               # (B, T, E)
    h = jax.nn.relu(jnp.dot(hist, p["w1"], precision=hp) + p["b1"])
    h = jax.nn.relu(jnp.dot(h, p["w2"], precision=hp) + p["b2"])
    embed = h.mean(axis=1)                                 # (B, H2)
    c = jax.nn.relu(jnp.dot(embed, p["wc1"], precision=hp) + p["bc1"])
    v = jnp.dot(c, p["wc2"], precision=hp) + p["bc2"]      # (B, 1)
    return v[:, 0]


if __name__ == "__main__":
    key = jax.random.PRNGKey(0)
    kp, ko, km = jax.random.split(key, 3)
    params = init_params(kp)
    wslab = pack_params(params)

    # obs in [0, V-2] so (obs+1) stays < NUM_EMBEDDINGS (matches torch module)
    observed = jax.random.randint(ko, (B, T, F), 0, NUM_EMBEDDINGS - 1,
                                  dtype=jnp.int32)
    mask = jax.random.randint(km, (B, T, F), 0, 2, dtype=jnp.int32)

    padded = jax.block_until_ready(cat_p_hist_critic(observed, mask, wslab))
    assert padded.shape == (1, NT)

    values = np.asarray(padded)[0, :B]     # verification-only slice of the
    ref = np.asarray(jax.block_until_ready(reference(observed, mask, params)))
    np.testing.assert_allclose(values, ref, rtol=1e-4, atol=1e-4)
    print("KERNEL_OK")
</pallas_src>

<mosaic_0001>
module attributes {stable_mosaic.version = 11 : i64} {
  func.func @_critic_kernel(%arg0: memref<8x128xi32, #tpu.memory_space<vmem>>, %arg1: memref<256x128xf32, #tpu.memory_space<vmem>>, %arg2: memref<1x128xf32, #tpu.memory_space<vmem>>) attributes {dimension_semantics = [], scalar_prefetch = 0 : i64, scratch_operands = 0 : i64, tpu.core_type = #tpu.core_type<tc>} {
    %c0 = arith.constant 0 : index
    %c0_0 = arith.constant 0 : index
    %0 = vector.load %arg0[%c0, %c0_0] : memref<8x128xi32, #tpu.memory_space<vmem>>, vector<4x128xi32>
    %c1_i32 = arith.constant 1 : i32
    %1 = vector.broadcast %c1_i32 : i32 to vector<4x128xi32>
    %2 = arith.addi %0, %1 : vector<4x128xi32>
    %c4 = arith.constant 4 : index
    %c0_1 = arith.constant 0 : index
    %3 = vector.load %arg0[%c4, %c0_1] : memref<8x128xi32, #tpu.memory_space<vmem>>, vector<4x128xi32>
    %4 = arith.muli %2, %3 : vector<4x128xi32>
    %5 = tpu.iota {dimensions = array<i32: 0>} : vector<32x128xi32>
    %c31_i32 = arith.constant 31 : i32
    %6 = vector.broadcast %c31_i32 : i32 to vector<32x128xi32>
    %7 = arith.cmpi eq, %5, %6 : vector<32x128xi32>
    %8 = arith.extui %7 : vector<32x128xi1> to vector<32x128xi32>
    %9 = vector.extract_strided_slice %4 {offsets = [0, 0], sizes = [1, 128], strides = [1, 1]} : vector<4x128xi32> to vector<1x128xi32>
    %10 = vector.broadcast %9 : vector<1x128xi32> to vector<32x128xi32>
    %11 = arith.cmpi eq, %10, %5 : vector<32x128xi32>
    %12 = arith.extui %11 : vector<32x128xi1> to vector<32x128xi32>
    %13 = arith.addi %8, %12 : vector<32x128xi32>
    %14 = vector.extract_strided_slice %4 {offsets = [1, 0], sizes = [1, 128], strides = [1, 1]} : vector<4x128xi32> to vector<1x128xi32>
    %15 = vector.broadcast %14 : vector<1x128xi32> to vector<32x128xi32>
    %16 = arith.cmpi eq, %15, %5 : vector<32x128xi32>
    %17 = arith.extui %16 : vector<32x128xi1> to vector<32x128xi32>
    %18 = arith.addi %13, %17 : vector<32x128xi32>
    %19 = vector.extract_strided_slice %4 {offsets = [2, 0], sizes = [1, 128], strides = [1, 1]} : vector<4x128xi32> to vector<1x128xi32>
    %20 = vector.broadcast %19 : vector<1x128xi32> to vector<32x128xi32>
    %21 = arith.cmpi eq, %20, %5 : vector<32x128xi32>
    %22 = arith.extui %21 : vector<32x128xi1> to vector<32x128xi32>
    %23 = arith.addi %18, %22 : vector<32x128xi32>
    %24 = vector.extract_strided_slice %4 {offsets = [3, 0], sizes = [1, 128], strides = [1, 1]} : vector<4x128xi32> to vector<1x128xi32>
    %25 = vector.broadcast %24 : vector<1x128xi32> to vector<32x128xi32>
    %26 = arith.cmpi eq, %25, %5 : vector<32x128xi32>
    %27 = arith.extui %26 : vector<32x128xi1> to vector<32x128xi32>
    %28 = arith.addi %23, %27 : vector<32x128xi32>
    %29 = arith.sitofp %28 : vector<32x128xi32> to vector<32x128xf32>
    %c0_2 = arith.constant 0 : index
    %c0_3 = arith.constant 0 : index
    %30 = vector.load %arg1[%c0_2, %c0_3] : memref<256x128xf32, #tpu.memory_space<vmem>>, vector<32x32xf32>
    %cst = arith.constant dense<0.000000e+00> : vector<32x128xf32>
    %31 = tpu.matmul %30, %29, %cst {dimension_numbers = #tpu.dot_dimension_numbers<[1], [0], [0], [1], [0, 0, 1, 1], [], []>} : vector<32x32xf32>, vector<32x128xf32>, vector<32x128xf32> -> vector<32x128xf32>
    %cst_4 = arith.constant 0.000000e+00 : f32
    %32 = vector.broadcast %cst_4 : f32 to vector<32x128xf32>
    %33 = arith.maximumf %31, %32 : vector<32x128xf32>
    %c32 = arith.constant 32 : index
    %c0_5 = arith.constant 0 : index
    %34 = vector.load %arg1[%c32, %c0_5] : memref<256x128xf32, #tpu.memory_space<vmem>>, vector<32x32xf32>
    %cst_6 = arith.constant dense<0.000000e+00> : vector<32x128xf32>
    %35 = tpu.matmul %34, %33, %cst_6 {dimension_numbers = #tpu.dot_dimension_numbers<[1], [0], [0], [1], [0, 0, 1, 1], [], []>} : vector<32x32xf32>, vector<32x128xf32>, vector<32x128xf32> -> vector<32x128xf32>
    %c96 = arith.constant 96 : index
    %c0_7 = arith.constant 0 : index
    %36 = vector.load %arg1[%c96, %c0_7] : memref<256x128xf32, #tpu.memory_space<vmem>>, vector<32x1xf32>
    %37 = vector.broadcast %36 : vector<32x1xf32> to vector<32x128xf32>
    %38 = arith.addf %35, %37 : vector<32x128xf32>
    %cst_8 = arith.constant 0.000000e+00 : f32
    %39 = vector.broadcast %cst_8 : f32 to vector<32x128xf32>
    %40 = arith.maximumf %38, %39 : vector<32x128xf32>
    %c128 = arith.constant 128 : index
    %c0_9 = arith.constant 0 : index
    %41 = vector.load %arg1[%c128, %c0_9] : memref<256x128xf32, #tpu.memory_space<vmem>>, vector<128x128xf32>
    %cst_10 = arith.constant dense<0.000000e+00> : vector<32x128xf32>
    %42 = tpu.matmul %40, %41, %cst_10 {dimension_numbers = #tpu.dot_dimension_numbers<[1], [0], [0], [1], [0, 0, 1, 1], [], []>} : vector<32x128xf32>, vector<128x128xf32>, vector<32x128xf32> -> vector<32x128xf32>
    %c64 = arith.constant 64 : index
    %c0_11 = arith.constant 0 : index
    %43 = vector.load %arg1[%c64, %c0_11] : memref<256x128xf32, #tpu.memory_space<vmem>>, vector<32x32xf32>
    %cst_12 = arith.constant dense<0.000000e+00> : vector<32x128xf32>
    %44 = tpu.matmul %43, %42, %cst_12 {dimension_numbers = #tpu.dot_dimension_numbers<[1], [0], [0], [1], [0, 0, 1, 1], [], []>} : vector<32x32xf32>, vector<32x128xf32>, vector<32x128xf32> -> vector<32x128xf32>
    %c96_13 = arith.constant 96 : index
    %c1 = arith.constant 1 : index
    %45 = vector.load %arg1[%c96_13, %c1] : memref<256x128xf32, #tpu.memory_space<vmem>>, vector<32x1xf32>
    %46 = vector.broadcast %45 : vector<32x1xf32> to vector<32x128xf32>
    %47 = arith.addf %44, %46 : vector<32x128xf32>
    %cst_14 = arith.constant 0.000000e+00 : f32
    %48 = vector.broadcast %cst_14 : f32 to vector<32x128xf32>
    %49 = arith.maximumf %47, %48 : vector<32x128xf32>
    %c96_15 = arith.constant 96 : index
    %c2 = arith.constant 2 : index
    %50 = vector.load %arg1[%c96_15, %c2] : memref<256x128xf32, #tpu.memory_space<vmem>>, vector<32x1xf32>
    %51 = vector.broadcast %50 : vector<32x1xf32> to vector<32x128xf32>
    %52 = arith.mulf %49, %51 : vector<32x128xf32>
    %cst_16 = arith.constant dense<0.000000e+00> : vector<128xf32>
    %53 = vector.multi_reduction <add>, %52, %cst_16 [0] : vector<32x128xf32> to vector<128xf32>
    %54 = vector.shape_cast %53 : vector<128xf32> to vector<1x128xf32>
    %c96_17 = arith.constant 96 : index
    %c3 = arith.constant 3 : index
    %55 = vector.load %arg1[%c96_17, %c3] : memref<256x128xf32, #tpu.memory_space<vmem>>, vector<1x1xf32>
    %56 = vector.broadcast %55 : vector<1x1xf32> to vector<1x128xf32>
    %57 = arith.addf %54, %56 : vector<1x128xf32>
    %c0_18 = arith.constant 0 : index
    %c0_19 = arith.constant 0 : index
    %58 = vector.load %arg2[%c0_18, %c0_19] : memref<1x128xf32, #tpu.memory_space<vmem>>, vector<1x128xf32>
    tpu.vector_store %arg2[%c0_18, %c0_19], %57 {strides = array<i32>} : memref<1x128xf32, #tpu.memory_space<vmem>>, vector<1x128xf32>,
    return
  }
}

</mosaic_0001>

<llo_original>
// kernel: cat_p_hist_critic.1
$region0: #{cat_p_hist_critic.1}
  #allocation0 [shape = 'u32[]', space=smem, size = 0x4, offset = 0x4, fixed_abs, tag = 'smem constant byte address 0x4 - core index']
  #allocation1 [shape = 'u32[144,128]{1,0:T(1,128)}', space=vmem, size = 0x12000, scoped, tag = 'internal scratch']
  %s0 = inlined_call_operand.vmem [shape: s32[8,128], index: 0, kind: input, shape index: {}]
  %s1 = inlined_call_operand.vmem [shape: f32[256,128], index: 1, kind: input, shape index: {}]
  %s2 = inlined_call_operand.hbm [shape: f32[1,128], index: 2, kind: output, shape index: {}]
  %s3 = sld [smem:[#allocation0]]
  $region18: #{cat_p_hist_critic.1} parent=0
    _
  %s5 = ssub.s32 1, %s3
  %s6 = scalar_select 0, %s5, %s3
  $region1: #{cat_p_hist_critic.1} parent=0
    #allocation2 [shape = 'u8[512]{0}', space=vmem, size = 0x400, scoped, tag = 'output window, operand 0, single buffered']
    #allocation3 [shape = 's32[1]{0}', space=sflag, size = 0x4, scoped, tag = 'scoped memory for cat_p_hist_critic.1']
    %7 = vsyncpa [#allocation3], 0
    // Predicated region
    $region2: #{cat_p_hist_critic.1} parent=1 // pred_check
      _
    $region3: #{cat_p_hist_critic.1} parent=1 // pred_check_branch
      %9 = sbr.rel (0) target = $region5
    $region4: #{cat_p_hist_critic.1} parent=1 // pred_region
      _
    $region5: #{cat_p_hist_critic.1} parent=1 // pred_fallthru
      _
    // Predicated region
    $region6: #{cat_p_hist_critic.1} parent=1 // pred_check
      _
    $region7: #{cat_p_hist_critic.1} parent=1 // pred_check_branch
      %11 = sbr.rel (0) target = $region9
    $region8: #{cat_p_hist_critic.1} parent=1 // pred_region
      _
    $region9: #{cat_p_hist_critic.1} parent=1 // pred_fallthru
      _
    %v12 = vld [vmem:[%s0] sm:$0xf]
    %v13 = vadd.s32 %v12, 1
    %v14 = vld [vmem:[%s0 + $0x4] sm:$0xf]
    %v15 = vmul.u32 %v13, %v14
    %v16 = vlaneseq
    %v17 = vshrl.u32 %v16, 7
    %v18 = vadd.s32 %v17, 8
    %v19 = vadd.s32 %v17, 16
    %v20 = vadd.s32 %v17, 24
    %vm21 = vcmp.eq.s32.totalorder %v17, 31
    %vm22 = vcmp.eq.s32.totalorder %v18, 31
    %vm23 = vcmp.eq.s32.totalorder %v19, 31
    %vm24 = vcmp.eq.s32.totalorder %v20, 31
    %v25 = vsel %vm21, 1, 0
    %v26 = vsel %vm22, 1, 0
    %v27 = vsel %vm23, 1, 0
    %v28 = vsel %vm24, 1, 0
    %v29 = vlaneseq
    %v30 = vshrl.u32 %v29, 7
    %v31 = vsub.s32 0, %v30
    %v32 = vrot.slane %v15, %v31
    %vm33 = vcmp.eq.s32.totalorder %v32, %v17
    %vm34 = vcmp.eq.s32.totalorder %v32, %v18
    %vm35 = vcmp.eq.s32.totalorder %v32, %v19
    %vm36 = vcmp.eq.s32.totalorder %v32, %v20
    %v37 = vsel %vm33, 1, 0
    %v38 = vsel %vm34, 1, 0
    %v39 = vsel %vm35, 1, 0
    %v40 = vsel %vm36, 1, 0
    %v41 = vadd.s32 %v25, %v37
    %v42 = vadd.s32 %v26, %v38
    %v43 = vadd.s32 %v27, %v39
    %v44 = vadd.s32 %v28, %v40
    %v45 = vlaneseq
    %v46 = vshrl.u32 %v45, 7
    %v47 = vsub.s32 1, %v46
    %v48 = vrot.slane %v15, %v47
    %vm49 = vcmp.eq.s32.totalorder %v48, %v17
    %vm50 = vcmp.eq.s32.totalorder %v48, %v18
    %vm51 = vcmp.eq.s32.totalorder %v48, %v19
    %vm52 = vcmp.eq.s32.totalorder %v48, %v20
    %v53 = vsel %vm49, 1, 0
    %v54 = vsel %vm50, 1, 0
    %v55 = vsel %vm51, 1, 0
    %v56 = vsel %vm52, 1, 0
    %v57 = vadd.s32 %v41, %v53
    %v58 = vadd.s32 %v42, %v54
    %v59 = vadd.s32 %v43, %v55
    %v60 = vadd.s32 %v44, %v56
    %v61 = vlaneseq
    %v62 = vshrl.u32 %v61, 7
    %v63 = vsub.s32 2, %v62
    %v64 = vrot.slane %v15, %v63
    %vm65 = vcmp.eq.s32.totalorder %v64, %v17
    %vm66 = vcmp.eq.s32.totalorder %v64, %v18
    %vm67 = vcmp.eq.s32.totalorder %v64, %v19
    %vm68 = vcmp.eq.s32.totalorder %v64, %v20
    %v69 = vsel %vm65, 1, 0
    %v70 = vsel %vm66, 1, 0
    %v71 = vsel %vm67, 1, 0
    %v72 = vsel %vm68, 1, 0
    %v73 = vadd.s32 %v57, %v69
    %v74 = vadd.s32 %v58, %v70
    %v75 = vadd.s32 %v59, %v71
    %v76 = vadd.s32 %v60, %v72
    %v77 = vlaneseq
    %v78 = vshrl.u32 %v77, 7
    %v79 = vsub.s32 3, %v78
    %v80 = vrot.slane %v15, %v79
    %vm81 = vcmp.eq.s32.totalorder %v80, %v17
    %vm82 = vcmp.eq.s32.totalorder %v80, %v18
    %vm83 = vcmp.eq.s32.totalorder %v80, %v19
    %vm84 = vcmp.eq.s32.totalorder %v80, %v20
    %v85 = vsel %vm81, 1, 0
    %v86 = vsel %vm82, 1, 0
    %v87 = vsel %vm83, 1, 0
    %v88 = vsel %vm84, 1, 0
    %v89 = vadd.s32 %v73, %v85
    %v90 = vadd.s32 %v74, %v86
    %v91 = vadd.s32 %v75, %v87
    %v92 = vadd.s32 %v76, %v88
    %v93 = vcvt.s32.f32 %v89
    %v94 = vcvt.s32.f32 %v90
    %v95 = vcvt.s32.f32 %v91
    %v96 = vcvt.s32.f32 %v92
    %v97 = vld [vmem:[%s1] sm:$0xff]
    %v98 = vld [vmem:[%s1 + $0x8] sm:$0xff]
    %v99 = vld [vmem:[%s1 + $0x10] sm:$0xff]
    %v100 = vld [vmem:[%s1 + $0x18] sm:$0xff]
    %vm101 = vcmask 261120
    %v103 = vsel %vm101, %v97, 0
    %v106 = vsel %vm101, %v98, 0
    %v109 = vsel %vm101, %v99, 0
    %v112 = vsel %vm101, %v100, 0
    %114 = vmatprep.subr.mxu0 0.0
    %115 = vmatpush1.msra.mxu0 %v93
    %116 = vmatprep.subr.mxu0 0.0
    %117 = vmatpush1.msra.mxu0 %v94
    %118 = vmatprep.subr.mxu0 0.0
    %119 = vmatpush1.msra.mxu0 %v95
    %120 = vmatprep.subr.mxu0 0.0
    %121 = vmatpush1.msra.mxu0 %v96
    %122 = vmatprep.subr.mxu0 0.0
    %123 = vmatpush1.msra.mxu0 0.0
    %124 = vmatprep.subr.mxu0 0.0
    %125 = vmatpush1.msra.mxu0 0.0
    %126 = vmatprep.subr.mxu0 0.0
    %127 = vmatpush1.msra.mxu0 0.0
    %128 = vmatprep.subr.mxu0 0.0
    %129 = vmatpush1.msra.mxu0 0.0
    %130 = vmatprep.subr.mxu0 0.0
    %131 = vmatpush1.msra.mxu0 0.0
    %132 = vmatprep.subr.mxu0 0.0
    %133 = vmatpush1.msra.mxu0 0.0
    %134 = vmatprep.subr.mxu0 0.0
    %135 = vmatpush1.msra.mxu0 0.0
    %136 = vmatprep.subr.mxu0 0.0
    %137 = vmatpush1.msra.mxu0 0.0
    %138 = vmatprep.subr.mxu0 0.0
    %139 = vmatpush1.msra.mxu0 0.0
    %140 = vmatprep.subr.mxu0 0.0
    %141 = vmatpush1.msra.mxu0 0.0
    %142 = vmatprep.subr.mxu0 0.0
    %143 = vmatpush1.msra.mxu0 0.0
    %144 = vmatprep.subr.mxu0 0.0
    %145 = vmatpush1.msra.mxu0 0.0
    %146 = vmatprep.subr.mxu0 0.0
    %147 = vmatpush1.msra.mxu0 0.0
    %148 = vmatprep.subr.mxu0 0.0
    %149 = vmatpush1.msra.mxu0 0.0
    %150 = vmatprep.subr.mxu0 0.0
    %151 = vmatpush1.msra.mxu0 0.0
    %152 = vmatprep.subr.mxu0 0.0
    %153 = vmatpush1.msra.mxu0 0.0
    %154 = vmatprep.subr.mxu0 0.0
    %155 = vmatpush1.msra.mxu0 0.0
    %156 = vmatprep.subr.mxu0 0.0
    %157 = vmatpush1.msra.mxu0 0.0
    %158 = vmatprep.subr.mxu0 0.0
    %159 = vmatpush1.msra.mxu0 0.0
    %160 = vmatprep.subr.mxu0 0.0
    %161 = vmatpush1.msra.mxu0 0.0
    %162 = vmatprep.subr.mxu0 0.0
    %163 = vmatpush1.msra.mxu0 0.0
    %164 = vmatprep.subr.mxu0 0.0
    %165 = vmatpush1.msra.mxu0 0.0
    %166 = vmatprep.subr.mxu0 0.0
    %167 = vmatpush1.msra.mxu0 0.0
    %168 = vmatprep.subr.mxu0 0.0
    %169 = vmatpush1.msra.mxu0 0.0
    %170 = vmatprep.subr.mxu0 0.0
    %171 = vmatpush1.msra.mxu0 0.0
    %172 = vmatprep.subr.mxu0 0.0
    %173 = vmatpush1.msra.mxu0 0.0
    %174 = vmatprep.subr.mxu0 0.0
    %175 = vmatpush1.msra.mxu0 0.0
    %176 = vmatprep.subr.mxu0 0.0
    %177 = vmatpush1.msra.mxu0 0.0
    %178 = vmatprep.mubr.f32.mxu0 0.0
    %179 = vmatmul.mubr.f32.gmra.mrb[0].mxu0 %v103
    %v180 = vpop.f32.mrb[0].mxu0
    %v181 = vadd.f32 0.0, %v180
    %v182 = vpop.f32.mrb[0].mxu0
    %183 = vmatprep.mubr.f32.mxu0 0.0
    %184 = vmatmul.mubr.f32.gmra.mrb[0].mxu0 %v106
    %v185 = vpop.f32.mrb[0].mxu0
    %v186 = vadd.f32 0.0, %v185
    %v187 = vpop.f32.mrb[0].mxu0
    %188 = vmatprep.mubr.f32.mxu0 0.0
    %189 = vmatmul.mubr.f32.gmra.mrb[0].mxu0 %v109
    %v190 = vpop.f32.mrb[0].mxu0
    %v191 = vadd.f32 0.0, %v190
    %v192 = vpop.f32.mrb[0].mxu0
    %193 = vmatprep.mubr.f32.mxu0 0.0
    %194 = vmatmul.mubr.f32.gmra.mrb[0].mxu0 %v112
    %v195 = vpop.f32.mrb[0].mxu0
    %v196 = vadd.f32 0.0, %v195
    %v197 = vpop.f32.mrb[0].mxu0
    %198 = vdwg.mxu0
    %v199 = vmax.f32 %v181, 0.0
    %v200 = vmax.f32 %v186, 0.0
    %v201 = vmax.f32 %v191, 0.0
    %v202 = vmax.f32 %v196, 0.0
    %v203 = vld [vmem:[%s1 + $0x20] sm:$0xff]
    %v204 = vld [vmem:[%s1 + $0x28] sm:$0xff]
    %v205 = vld [vmem:[%s1 + $0x30] sm:$0xff]
    %v206 = vld [vmem:[%s1 + $0x38] sm:$0xff]
    %v207 = vld [vmem:[%s1 + $0x60] sm:$0xff]
    %v208 = vld [vmem:[%s1 + $0x68] sm:$0xff]
    %v209 = vld [vmem:[%s1 + $0x70] sm:$0xff]
    %v210 = vld [vmem:[%s1 + $0x78] sm:$0xff]
    %212 = vset.pattern.permute.xlu0 0
    %213 = vperm.xlu0 %212, %v207
    %v214 = vpop.permute.xlu0 %213
    %217 = vset.pattern.permute.xlu0 0
    %218 = vperm.xlu0 %217, %v208
    %v219 = vpop.permute.xlu0 %218
    %222 = vset.pattern.permute.xlu0 0
    %223 = vperm.xlu0 %222, %v209
    %v224 = vpop.permute.xlu0 %223
    %227 = vset.pattern.permute.xlu0 0
    %228 = vperm.xlu0 %227, %v210
    %v229 = vpop.permute.xlu0 %228
    %v232 = vsel %vm101, %v203, 0
    %v235 = vsel %vm101, %v204, 0
    %v238 = vsel %vm101, %v205, 0
    %v241 = vsel %vm101, %v206, 0
    %243 = vmatprep.subr.mxu0 0.0
    %244 = vmatpush1.msra.mxu0 %v199
    %245 = vmatprep.subr.mxu0 0.0
    %246 = vmatpush1.msra.mxu0 %v200
    %247 = vmatprep.subr.mxu0 0.0
    %248 = vmatpush1.msra.mxu0 %v201
    %249 = vmatprep.subr.mxu0 0.0
    %250 = vmatpush1.msra.mxu0 %v202
    %251 = vmatprep.subr.mxu0 0.0
    %252 = vmatpush1.msra.mxu0 0.0
    %253 = vmatprep.subr.mxu0 0.0
    %254 = vmatpush1.msra.mxu0 0.0
    %255 = vmatprep.subr.mxu0 0.0
    %256 = vmatpush1.msra.mxu0 0.0
    %257 = vmatprep.subr.mxu0 0.0
    %258 = vmatpush1.msra.mxu0 0.0
    %259 = vmatprep.subr.mxu0 0.0
    %260 = vmatpush1.msra.mxu0 0.0
    %261 = vmatprep.subr.mxu0 0.0
    %262 = vmatpush1.msra.mxu0 0.0
    %263 = vmatprep.subr.mxu0 0.0
    %264 = vmatpush1.msra.mxu0 0.0
    %265 = vmatprep.subr.mxu0 0.0
    %266 = vmatpush1.msra.mxu0 0.0
    %267 = vmatprep.subr.mxu0 0.0
    %268 = vmatpush1.msra.mxu0 0.0
    %269 = vmatprep.subr.mxu0 0.0
    %270 = vmatpush1.msra.mxu0 0.0
    %271 = vmatprep.subr.mxu0 0.0
    %272 = vmatpush1.msra.mxu0 0.0
    %273 = vmatprep.subr.mxu0 0.0
    %274 = vmatpush1.msra.mxu0 0.0
    %275 = vmatprep.subr.mxu0 0.0
    %276 = vmatpush1.msra.mxu0 0.0
    %277 = vmatprep.subr.mxu0 0.0
    %278 = vmatpush1.msra.mxu0 0.0
    %279 = vmatprep.subr.mxu0 0.0
    %280 = vmatpush1.msra.mxu0 0.0
    %281 = vmatprep.subr.mxu0 0.0
    %282 = vmatpush1.msra.mxu0 0.0
    %283 = vmatprep.subr.mxu0 0.0
    %284 = vmatpush1.msra.mxu0 0.0
    %285 = vmatprep.subr.mxu0 0.0
    %286 = vmatpush1.msra.mxu0 0.0
    %287 = vmatprep.subr.mxu0 0.0
    %288 = vmatpush1.msra.mxu0 0.0
    %289 = vmatprep.subr.mxu0 0.0
    %290 = vmatpush1.msra.mxu0 0.0
    %291 = vmatprep.subr.mxu0 0.0
    %292 = vmatpush1.msra.mxu0 0.0
    %293 = vmatprep.subr.mxu0 0.0
    %294 = vmatpush1.msra.mxu0 0.0
    %295 = vmatprep.subr.mxu0 0.0
    %296 = vmatpush1.msra.mxu0 0.0
    %297 = vmatprep.subr.mxu0 0.0
    %298 = vmatpush1.msra.mxu0 0.0
    %299 = vmatprep.subr.mxu0 0.0
    %300 = vmatpush1.msra.mxu0 0.0
    %301 = vmatprep.subr.mxu0 0.0
    %302 = vmatpush1.msra.mxu0 0.0
    %303 = vmatprep.subr.mxu0 0.0
    %304 = vmatpush1.msra.mxu0 0.0
    %305 = vmatprep.subr.mxu0 0.0
    %306 = vmatpush1.msra.mxu0 0.0
    %307 = vmatprep.mubr.f32.mxu0 0.0
    %308 = vmatmul.mubr.f32.gmra.mrb[0].mxu0 %v232
    %v309 = vpop.f32.mrb[0].mxu0
    %v310 = vadd.f32 %v214, %v309
    %v311 = vpop.f32.mrb[0].mxu0
    %312 = vmatprep.mubr.f32.mxu0 0.0
    %313 = vmatmul.mubr.f32.gmra.mrb[0].mxu0 %v235
    %v314 = vpop.f32.mrb[0].mxu0
    %v315 = vadd.f32 %v219, %v314
    %v316 = vpop.f32.mrb[0].mxu0
    %317 = vmatprep.mubr.f32.mxu0 0.0
    %318 = vmatmul.mubr.f32.gmra.mrb[0].mxu0 %v238
    %v319 = vpop.f32.mrb[0].mxu0
    %v320 = vadd.f32 %v224, %v319
    %v321 = vpop.f32.mrb[0].mxu0
    %322 = vmatprep.mubr.f32.mxu0 0.0
    %323 = vmatmul.mubr.f32.gmra.mrb[0].mxu0 %v241
    %v324 = vpop.f32.mrb[0].mxu0
    %v325 = vadd.f32 %v229, %v324
    %v326 = vpop.f32.mrb[0].mxu0
    %327 = vdwg.mxu0
    %v328 = vmax.f32 %v310, 0.0
    %v329 = vmax.f32 %v315, 0.0
    %v330 = vmax.f32 %v320, 0.0
    %v331 = vmax.f32 %v325, 0.0
    %v332 = vld [vmem:[%s1 + $0x80] sm:$0xff]
    %v333 = vld [vmem:[%s1 + $0x88] sm:$0xff]
    %v334 = vld [vmem:[%s1 + $0x90] sm:$0xff]
    %v335 = vld [vmem:[%s1 + $0x98] sm:$0xff]
    %v336 = vld [vmem:[%s1 + $0xa0] sm:$0xff]
    %v337 = vld [vmem:[%s1 + $0xa8] sm:$0xff]
    %v338 = vld [vmem:[%s1 + $0xb0] sm:$0xff]
    %v339 = vld [vmem:[%s1 + $0xb8] sm:$0xff]
    %v340 = vld [vmem:[%s1 + $0xc0] sm:$0xff]
    %v341 = vld [vmem:[%s1 + $0xc8] sm:$0xff]
    %v342 = vld [vmem:[%s1 + $0xd0] sm:$0xff]
    %v343 = vld [vmem:[%s1 + $0xd8] sm:$0xff]
    %v344 = vld [vmem:[%s1 + $0xe0] sm:$0xff]
    %v345 = vld [vmem:[%s1 + $0xe8] sm:$0xff]
    %v346 = vld [vmem:[%s1 + $0xf0] sm:$0xff]
    %v347 = vld [vmem:[%s1 + $0xf8] sm:$0xff]
    %348 = vmatprep.subr.mxu0 0.0
    %349 = vmatpush1.msra.mxu0 %v332
    %350 = vmatprep.subr.mxu0 0.0
    %351 = vmatpush1.msra.mxu0 %v333
    %352 = vmatprep.subr.mxu0 0.0
    %353 = vmatpush1.msra.mxu0 %v334
    %354 = vmatprep.subr.mxu0 0.0
    %355 = vmatpush1.msra.mxu0 %v335
    %356 = vmatprep.subr.mxu0 0.0
    %357 = vmatpush1.msra.mxu0 %v336
    %358 = vmatprep.subr.mxu0 0.0
    %359 = vmatpush1.msra.mxu0 %v337
    %360 = vmatprep.subr.mxu0 0.0
    %361 = vmatpush1.msra.mxu0 %v338
    %362 = vmatprep.subr.mxu0 0.0
    %363 = vmatpush1.msra.mxu0 %v339
    %364 = vmatprep.subr.mxu0 0.0
    %365 = vmatpush1.msra.mxu0 %v340
    %366 = vmatprep.subr.mxu0 0.0
    %367 = vmatpush1.msra.mxu0 %v341
    %368 = vmatprep.subr.mxu0 0.0
    %369 = vmatpush1.msra.mxu0 %v342
    %370 = vmatprep.subr.mxu0 0.0
    %371 = vmatpush1.msra.mxu0 %v343
    %372 = vmatprep.subr.mxu0 0.0
    %373 = vmatpush1.msra.mxu0 %v344
    %374 = vmatprep.subr.mxu0 0.0
    %375 = vmatpush1.msra.mxu0 %v345
    %376 = vmatprep.subr.mxu0 0.0
    %377 = vmatpush1.msra.mxu0 %v346
    %378 = vmatprep.subr.mxu0 0.0
    %379 = vmatpush1.msra.mxu0 %v347
    %380 = vmatprep.subr.mxu0 0.0
    %381 = vmatpush1.msra.mxu0 0.0
    %382 = vmatprep.subr.mxu0 0.0
    %383 = vmatpush1.msra.mxu0 0.0
    %384 = vmatprep.subr.mxu0 0.0
    %385 = vmatpush1.msra.mxu0 0.0
    %386 = vmatprep.subr.mxu0 0.0
    %387 = vmatpush1.msra.mxu0 0.0
    %388 = vmatprep.subr.mxu0 0.0
    %389 = vmatpush1.msra.mxu0 0.0
    %390 = vmatprep.subr.mxu0 0.0
    %391 = vmatpush1.msra.mxu0 0.0
    %392 = vmatprep.subr.mxu0 0.0
    %393 = vmatpush1.msra.mxu0 0.0
    %394 = vmatprep.subr.mxu0 0.0
    %395 = vmatpush1.msra.mxu0 0.0
    %396 = vmatprep.subr.mxu0 0.0
    %397 = vmatpush1.msra.mxu0 0.0
    %398 = vmatprep.subr.mxu0 0.0
    %399 = vmatpush1.msra.mxu0 0.0
    %400 = vmatprep.subr.mxu0 0.0
    %401 = vmatpush1.msra.mxu0 0.0
    %402 = vmatprep.subr.mxu0 0.0
    %403 = vmatpush1.msra.mxu0 0.0
    %404 = vmatprep.subr.mxu0 0.0
    %405 = vmatpush1.msra.mxu0 0.0
    %406 = vmatprep.subr.mxu0 0.0
    %407 = vmatpush1.msra.mxu0 0.0
    %408 = vmatprep.subr.mxu0 0.0
    %409 = vmatpush1.msra.mxu0 0.0
    %410 = vmatprep.subr.mxu0 0.0
    %411 = vmatpush1.msra.mxu0 0.0
    %412 = vmatprep.mubr.f32.mxu0 0.0
    %413 = vmatmul.mubr.f32.gmra.mrb[0].mxu0 %v328
    %v414 = vpop.f32.mrb[0].mxu0
    %v415 = vadd.f32 0.0, %v414
    %v416 = vpop.f32.mrb[0].mxu0
    %417 = vmatprep.mubr.f32.mxu0 0.0
    %418 = vmatmul.mubr.f32.gmra.mrb[0].mxu0 %v329
    %v419 = vpop.f32.mrb[0].mxu0
    %v420 = vadd.f32 0.0, %v419
    %v421 = vpop.f32.mrb[0].mxu0
    %422 = vmatprep.mubr.f32.mxu0 0.0
    %423 = vmatmul.mubr.f32.gmra.mrb[0].mxu0 %v330
    %v424 = vpop.f32.mrb[0].mxu0
    %v425 = vadd.f32 0.0, %v424
    %v426 = vpop.f32.mrb[0].mxu0
    %427 = vmatprep.mubr.f32.mxu0 0.0
    %428 = vmatmul.mubr.f32.gmra.mrb[0].mxu0 %v331
    %v429 = vpop.f32.mrb[0].mxu0
    %v430 = vadd.f32 0.0, %v429
    %v431 = vpop.f32.mrb[0].mxu0
    %432 = vdwg.mxu0
    %v433 = vld [vmem:[%s1 + $0x40] sm:$0xff]
    %v434 = vld [vmem:[%s1 + $0x48] sm:$0xff]
    %v435 = vld [vmem:[%s1 + $0x50] sm:$0xff]
    %v436 = vld [vmem:[%s1 + $0x58] sm:$0xff]
    %437 = vset.pattern.permute.xlu0 1
    %438 = vperm.xlu0 %437, %v207
    %v439 = vpop.permute.xlu0 %438
    %441 = vset.pattern.permute.xlu0 1
    %442 = vperm.xlu0 %441, %v208
    %v443 = vpop.permute.xlu0 %442
    %445 = vset.pattern.permute.xlu0 1
    %446 = vperm.xlu0 %445, %v209
    %v447 = vpop.permute.xlu0 %446
    %449 = vset.pattern.permute.xlu0 1
    %450 = vperm.xlu0 %449, %v210
    %v451 = vpop.permute.xlu0 %450
    %v454 = vsel %vm101, %v433, 0
    %v457 = vsel %vm101, %v434, 0
    %v460 = vsel %vm101, %v435, 0
    %v463 = vsel %vm101, %v436, 0
    %465 = vmatprep.subr.mxu0 0.0
    %466 = vmatpush1.msra.mxu0 %v415
    %467 = vmatprep.subr.mxu0 0.0
    %468 = vmatpush1.msra.mxu0 %v420
    %469 = vmatprep.subr.mxu0 0.0
    %470 = vmatpush1.msra.mxu0 %v425
    %471 = vmatprep.subr.mxu0 0.0
    %472 = vmatpush1.msra.mxu0 %v430
    %473 = vmatprep.subr.mxu0 0.0
    %474 = vmatpush1.msra.mxu0 0.0
    %475 = vmatprep.subr.mxu0 0.0
    %476 = vmatpush1.msra.mxu0 0.0
    %477 = vmatprep.subr.mxu0 0.0
    %478 = vmatpush1.msra.mxu0 0.0
    %479 = vmatprep.subr.mxu0 0.0
    %480 = vmatpush1.msra.mxu0 0.0
    %481 = vmatprep.subr.mxu0 0.0
    %482 = vmatpush1.msra.mxu0 0.0
    %483 = vmatprep.subr.mxu0 0.0
    %484 = vmatpush1.msra.mxu0 0.0
    %485 = vmatprep.subr.mxu0 0.0
    %486 = vmatpush1.msra.mxu0 0.0
    %487 = vmatprep.subr.mxu0 0.0
    %488 = vmatpush1.msra.mxu0 0.0
    %489 = vmatprep.subr.mxu0 0.0
    %490 = vmatpush1.msra.mxu0 0.0
    %491 = vmatprep.subr.mxu0 0.0
    %492 = vmatpush1.msra.mxu0 0.0
    %493 = vmatprep.subr.mxu0 0.0
    %494 = vmatpush1.msra.mxu0 0.0
    %495 = vmatprep.subr.mxu0 0.0
    %496 = vmatpush1.msra.mxu0 0.0
    %497 = vmatprep.subr.mxu0 0.0
    %498 = vmatpush1.msra.mxu0 0.0
    %499 = vmatprep.subr.mxu0 0.0
    %500 = vmatpush1.msra.mxu0 0.0
    %501 = vmatprep.subr.mxu0 0.0
    %502 = vmatpush1.msra.mxu0 0.0
    %503 = vmatprep.subr.mxu0 0.0
    %504 = vmatpush1.msra.mxu0 0.0
    %505 = vmatprep.subr.mxu0 0.0
    %506 = vmatpush1.msra.mxu0 0.0
    %507 = vmatprep.subr.mxu0 0.0
    %508 = vmatpush1.msra.mxu0 0.0
    %509 = vmatprep.subr.mxu0 0.0
    %510 = vmatpush1.msra.mxu0 0.0
    %511 = vmatprep.subr.mxu0 0.0
    %512 = vmatpush1.msra.mxu0 0.0
    %513 = vmatprep.subr.mxu0 0.0
    %514 = vmatpush1.msra.mxu0 0.0
    %515 = vmatprep.subr.mxu0 0.0
    %516 = vmatpush1.msra.mxu0 0.0
    %517 = vmatprep.subr.mxu0 0.0
    %518 = vmatpush1.msra.mxu0 0.0
    %519 = vmatprep.subr.mxu0 0.0
    %520 = vmatpush1.msra.mxu0 0.0
    %521 = vmatprep.subr.mxu0 0.0
    %522 = vmatpush1.msra.mxu0 0.0
    %523 = vmatprep.subr.mxu0 0.0
    %524 = vmatpush1.msra.mxu0 0.0
    %525 = vmatprep.subr.mxu0 0.0
    %526 = vmatpush1.msra.mxu0 0.0
    %527 = vmatprep.subr.mxu0 0.0
    %528 = vmatpush1.msra.mxu0 0.0
    %529 = vmatprep.mubr.f32.mxu0 0.0
    %530 = vmatmul.mubr.f32.gmra.mrb[0].mxu0 %v454
    %v531 = vpop.f32.mrb[0].mxu0
    %v532 = vadd.f32 %v439, %v531
    %v533 = vpop.f32.mrb[0].mxu0
    %534 = vmatprep.mubr.f32.mxu0 0.0
    %535 = vmatmul.mubr.f32.gmra.mrb[0].mxu0 %v457
    %v536 = vpop.f32.mrb[0].mxu0
    %v537 = vadd.f32 %v443, %v536
    %v538 = vpop.f32.mrb[0].mxu0
    %539 = vmatprep.mubr.f32.mxu0 0.0
    %540 = vmatmul.mubr.f32.gmra.mrb[0].mxu0 %v460
    %v541 = vpop.f32.mrb[0].mxu0
    %v542 = vadd.f32 %v447, %v541
    %v543 = vpop.f32.mrb[0].mxu0
    %544 = vmatprep.mubr.f32.mxu0 0.0
    %545 = vmatmul.mubr.f32.gmra.mrb[0].mxu0 %v463
    %v546 = vpop.f32.mrb[0].mxu0
    %v547 = vadd.f32 %v451, %v546
    %v548 = vpop.f32.mrb[0].mxu0
    %549 = vdwg.mxu0
    %v550 = vmax.f32 %v532, 0.0
    %v551 = vmax.f32 %v537, 0.0
    %v552 = vmax.f32 %v542, 0.0
    %v553 = vmax.f32 %v547, 0.0
    %554 = vset.pattern.permute.xlu0 2
    %555 = vperm.xlu0 %554, %v207
    %v556 = vpop.permute.xlu0 %555
    %558 = vset.pattern.permute.xlu0 2
    %559 = vperm.xlu0 %558, %v208
    %v560 = vpop.permute.xlu0 %559
    %562 = vset.pattern.permute.xlu0 2
    %563 = vperm.xlu0 %562, %v209
    %v564 = vpop.permute.xlu0 %563
    %566 = vset.pattern.permute.xlu0 2
    %567 = vperm.xlu0 %566, %v210
    %v568 = vpop.permute.xlu0 %567
    %v570 = vmul.f32 %v550, %v556
    %v571 = vmul.f32 %v551, %v560
    %v572 = vmul.f32 %v552, %v564
    %v573 = vmul.f32 %v553, %v568
    %v574 = vadd.f32 %v570, %v571
    %v575 = vadd.f32 %v574, %v572
    %v576 = vadd.f32 %v575, %v573
    %v577 = vrot.slane %v576, 4
    %v578 = vadd.f32 %v576, %v577
    %v579 = vrot.slane %v578, 2
    %v580 = vadd.f32 %v578, %v579
    %v581 = vrot.slane %v580, 1
    %v582 = vadd.f32 %v580, %v581
    %v583 = vld [vmem:[%s1 + $0x60] sm:$0x1]
    %585 = vset.pattern.permute.xlu0 3
    %586 = vperm.xlu0 %585, %v583
    %v587 = vpop.permute.xlu0 %586
    %v589 = vadd.f32 %v582, %v587
    %590 = vst [vmem:[#allocation2] sm:$0x1] %v589
    // Predicated region
    $region10: #{cat_p_hist_critic.1} parent=1 // pred_check
      _
    $region11: #{cat_p_hist_critic.1} parent=1 // pred_check_branch
      %592 = sbr.rel (0) target = $region13
    $region12: #{cat_p_hist_critic.1} parent=1 // pred_region
      %s594 = ssub.s32 16, 16
      %595 = vsyncadd [#allocation3], %s594
      %s597 = sshll.u32 [#allocation2], 4
      %s598 = int_to_ptr.vmem [resolvable:$true] %s597
      %600 = dma.vmem_to_hbm [thread:$0]  %s598, 16, %s2, [#allocation3]
    $region13: #{cat_p_hist_critic.1} parent=1 // pred_fallthru
      _
    // Predicated region
    $region14: #{cat_p_hist_critic.1} parent=1 // pred_check
      _
    $region15: #{cat_p_hist_critic.1} parent=1 // pred_check_branch
      %602 = sbr.rel (0) target = $region17
    $region16: #{cat_p_hist_critic.1} parent=1 // pred_region
      %603 = dma.done [#allocation3], 16
    $region17: #{cat_p_hist_critic.1} parent=1 // pred_fallthru
      _
    %604 = vsyncpa [#allocation3], 1

</llo_original>
